<compile_context>
chip_gen: v7x
topology: tpu7x:2x2x1
jax: 0.10.0
libtpu: 0.0.40
codegen_flags: <defaults>
</compile_context>

<pallas_src>
import math

import jax
import jax.numpy as jnp
from jax.experimental import pallas as pl
from jax.experimental.pallas import tpu as pltpu


def _round_up(x, m):
    return (x + m - 1) // m * m


def _tensorcores_per_chip():
    """2 on v7x (megacore), 1 on v5e/v6e and on non-TPU backends."""
    try:
        dev = jax.devices()[0]
        if dev.platform != "tpu":
            return 1
        kind = str(getattr(dev, "device_kind", "")).lower()
        return 2 if ("v7" in kind or "7x" in kind) else 1
    except Exception:
        return 1


def _make_policy_kernel(n_layers):
    """Kernel factory for an MLP with `n_layers` hidden (tanh) layers + linear output."""
    n_wb = 2 * (n_layers + 1)

    def kernel(*refs):
        obs_ref = refs[0]
        wb = refs[1:1 + n_wb]          # W1, b1, ..., W_out, b_out   (VMEM-resident)
        std_ref = refs[1 + n_wb]       # (1, ac_dim)  exp(logstd)
        eps_ref = refs[2 + n_wb]       # (tile, ac_dim)  N(0,1) noise
        mean_ref = refs[3 + n_wb]      # (tile, ac_dim)
        act_ref = refs[4 + n_wb]       # (tile, ac_dim)

        h = obs_ref[...]
        for l in range(n_layers):
            w, b = wb[2 * l][...], wb[2 * l + 1][...]
            # hidden layer: tanh(h @ W + b), f32 MXU accumulation
            h = jnp.tanh(jnp.dot(h, w, preferred_element_type=jnp.float32) + b)
        w_out, b_out = wb[2 * n_layers][...], wb[2 * n_layers + 1][...]
        mean = jnp.dot(h, w_out, preferred_element_type=jnp.float32) + b_out

        mean_ref[...] = mean
        # rsample: mean + exp(logstd) * eps  (fused; eps streamed in, std broadcast)
        act_ref[...] = mean + std_ref[...] * eps_ref[...]

    return kernel


def prepare_params(params):
    """Zero-pad raw parameters to 128-lane-aligned hidden shapes (done once per update)."""
    Ws, bs, logstd = params["Ws"], params["bs"], params["logstd"]
    n_layers = len(Ws) - 1
    ob_dim, size = Ws[0].shape
    ac_dim = Ws[-1].shape[1]
    hid = max(128, _round_up(size, 128))
    f32 = jnp.float32

    Wp, bp = [], []
    # input -> hidden
    Wp.append(jnp.zeros((ob_dim, hid), f32).at[:, :size].set(Ws[0]))
    bp.append(jnp.zeros((1, hid), f32).at[:, :size].set(bs[0]))
    # hidden -> hidden
    for l in range(1, n_layers):
        Wp.append(jnp.zeros((hid, hid), f32).at[:size, :size].set(Ws[l]))
        bp.append(jnp.zeros((1, hid), f32).at[:, :size].set(bs[l]))
    # hidden -> output (kept lane-narrow: only ac_dim columns, no padded writeback lanes)
    Wp.append(jnp.zeros((hid, ac_dim), f32).at[:size, :].set(Ws[n_layers]))
    bp.append(bs[n_layers].reshape(1, ac_dim).astype(f32))

    std = jnp.exp(logstd.reshape(1, ac_dim)).astype(f32)
    return dict(Ws=Wp, bs=bp, std=std, ob_dim=ob_dim, ac_dim=ac_dim, hid=hid,
                n_layers=n_layers)


def mlp_policy_forward(obs, packed, *, rng_key=None, batch_tile=2048):
    """MLPPolicy forward (mean + rsample) as a single fused Pallas kernel.

    obs:    (B, ob_dim) float32
    packed: output of prepare_params(params)
    returns (action, mean), both (B, ac_dim) float32
    """
    if rng_key is None:
        rng_key = jax.random.PRNGKey(0)
    obs = jnp.asarray(obs, jnp.float32)
    B, ob_dim = obs.shape
    assert ob_dim == packed["ob_dim"]
    ac_dim, n_layers = packed["ac_dim"], packed["n_layers"]

    # Noise drawn once per call, independent of the tiling (reproducible across tile sizes).
    eps = jax.random.normal(rng_key, (B, ac_dim), jnp.float32)

    # Tile choice: as large as batch_tile allows (amortizes the ~0.35 us grid-step overhead);
    # on 2-TC chips (v7x) keep an even number of >= 2 grid steps so both cores stay loaded.
    n_tc = _tensorcores_per_chip()
    tile = min(max(8, _round_up(batch_tile, 8)), _round_up(B, 8))
    steps = pl.cdiv(B, tile)
    if n_tc >= 2 and B > 8:
        steps = max(2, steps)
        if steps % 2:
            steps += 1
        tile = max(8, _round_up(pl.cdiv(B, steps), 8))
        steps = pl.cdiv(B, tile)
    B_pad = steps * tile
    if B_pad != B:
        obs = jnp.pad(obs, ((0, B_pad - B), (0, 0)))
        eps = jnp.pad(eps, ((0, B_pad - B), (0, 0)))

    # Weight/bias specs: whole (padded) arrays, constant block index -> fetched once,
    # resident in VMEM across all grid steps.
    wb_specs, wb_args = [], []
    for l in range(n_layers + 1):
        W, b = packed["Ws"][l], packed["bs"][l]
        wb_specs += [pl.BlockSpec(W.shape, lambda i: (0, 0)),
                     pl.BlockSpec(b.shape, lambda i: (0, 0))]
        wb_args += [W, b]

    kernel = _make_policy_kernel(n_layers)

    mean_p, act_p = pl.pallas_call(
        kernel,
        out_shape=(jax.ShapeDtypeStruct((B_pad, ac_dim), jnp.float32),
                   jax.ShapeDtypeStruct((B_pad, ac_dim), jnp.float32)),
        grid=(steps,),
        in_specs=(
            [pl.BlockSpec((tile, ob_dim), lambda i: (i, 0))]      # obs tile
            + wb_specs                                            # weights / biases
            + [pl.BlockSpec((1, ac_dim), lambda i: (0, 0)),       # exp(logstd)
               pl.BlockSpec((tile, ac_dim), lambda i: (i, 0))]    # eps tile
        ),
        out_specs=(pl.BlockSpec((tile, ac_dim), lambda i: (i, 0)),   # mean
                   pl.BlockSpec((tile, ac_dim), lambda i: (i, 0))),  # action
        compiler_params=pltpu.CompilerParams(
            dimension_semantics=("parallel",),
            vmem_limit_bytes=32 * 1024 * 1024,   # headroom for tile=2048 on v5e's 16MB default
        ),
    )(obs, *wb_args, packed["std"], eps)

    return act_p[:B], mean_p[:B]


def init_params(key, ob_dim, ac_dim, n_layers, size):
    """Deterministic init mimicking PyTorch nn.Linear default U(-1/sqrt(fan_in), +...)."""
    dims = [ob_dim] + [size] * n_layers + [ac_dim]
    keys = jax.random.split(key, 2 * (n_layers + 1))
    Ws, bs = [], []
    for l in range(n_layers + 1):
        fan_in, fan_out = dims[l], dims[l + 1]
        bound = 1.0 / math.sqrt(fan_in)
        Ws.append(jax.random.uniform(keys[2 * l], (fan_in, fan_out), jnp.float32, -bound, bound))
        bs.append(jax.random.uniform(keys[2 * l + 1], (1, fan_out), jnp.float32, -bound, bound))
    logstd = jnp.zeros((1, ac_dim), jnp.float32)   # nn.Parameter(torch.zeros(ac_dim))
    return dict(Ws=Ws, bs=bs, logstd=logstd)


def reference_mean(obs, params):
    P = jax.lax.Precision.HIGHEST
    h = obs
    n = len(params["Ws"]) - 1
    for l in range(n):
        h = jnp.tanh(jnp.dot(h, params["Ws"][l], precision=P) + params["bs"][l])
    return jnp.dot(h, params["Ws"][n], precision=P) + params["bs"][n]


if __name__ == "__main__":
    # MLPPolicy(ac_dim=8, ob_dim=16, n_layers=2, size=32, discrete=False)
    B, ob_dim, ac_dim, n_layers, size = 64, 16, 8, 2, 32

    key = jax.random.PRNGKey(0)
    k_obs, k_params, k_noise = jax.random.split(key, 3)
    obs = jax.random.normal(k_obs, (B, ob_dim), jnp.float32)
    params = init_params(k_params, ob_dim, ac_dim, n_layers, size)
    packed = prepare_params(params)

    action, mean = mlp_policy_forward(obs, packed, rng_key=k_noise)
    jax.block_until_ready((action, mean))

    assert mean.shape == (B, ac_dim) and action.shape == (B, ac_dim)

    # Deterministic part (mean_net) must match the plain-JAX reference.
    ref_mean = reference_mean(obs, params)
    assert jnp.allclose(mean, ref_mean, atol=1e-4, rtol=1e-4), \
        float(jnp.max(jnp.abs(mean - ref_mean)))

    # Stochastic part: action must equal mean + exp(logstd) * eps for the exact eps drawn
    # from k_noise (noise is a pure function of the key and B, not of the tiling).
    eps = jax.random.normal(k_noise, (B, ac_dim), jnp.float32)
    std = jnp.exp(params["logstd"])
    assert jnp.allclose(action, mean + std * eps, atol=1e-5, rtol=1e-5)
    assert bool(jnp.all(jnp.isfinite(action)))

    # Same key -> identical outputs.
    action2, mean2 = mlp_policy_forward(obs, packed, rng_key=k_noise)
    assert jnp.array_equal(mean, mean2) and jnp.array_equal(action, action2)

    # TODO(synk): discrete branch (softmax + Categorical.sample) not implemented; the
    # module defaults to the continuous Normal policy implemented here.
    print("KERNEL_OK")
</pallas_src>

<mosaic_0001>
module attributes {stable_mosaic.version = 11 : i64} {
  func.func @kernel(%arg0: i32, %arg1: memref<64x16xf32, #tpu.memory_space<vmem>>, %arg2: memref<16x128xf32, #tpu.memory_space<vmem>>, %arg3: memref<1x128xf32, #tpu.memory_space<vmem>>, %arg4: memref<128x128xf32, #tpu.memory_space<vmem>>, %arg5: memref<1x128xf32, #tpu.memory_space<vmem>>, %arg6: memref<128x8xf32, #tpu.memory_space<vmem>>, %arg7: memref<1x8xf32, #tpu.memory_space<vmem>>, %arg8: memref<1x8xf32, #tpu.memory_space<vmem>>, %arg9: memref<64x8xf32, #tpu.memory_space<vmem>>, %arg10: memref<64x8xf32, #tpu.memory_space<vmem>>, %arg11: memref<64x8xf32, #tpu.memory_space<vmem>>) attributes {dimension_semantics = [#tpu.dimension_semantics<parallel>], iteration_bounds = array<i64: 1>, scalar_prefetch = 0 : i64, scratch_operands = 0 : i64, tpu.core_type = #tpu.core_type<tc>, window_params = [{transform_indices = @transform_0, window_bounds = array<i64: 64, 16>}, {pipeline_mode = #tpu.pipeline_mode<synchronous>, transform_indices = @transform_1, window_bounds = array<i64: 16, 128>}, {pipeline_mode = #tpu.pipeline_mode<synchronous>, transform_indices = @transform_2, window_bounds = array<i64: 1, 128>}, {pipeline_mode = #tpu.pipeline_mode<synchronous>, transform_indices = @transform_3, window_bounds = array<i64: 128, 128>}, {pipeline_mode = #tpu.pipeline_mode<synchronous>, transform_indices = @transform_4, window_bounds = array<i64: 1, 128>}, {pipeline_mode = #tpu.pipeline_mode<synchronous>, transform_indices = @transform_5, window_bounds = array<i64: 128, 8>}, {pipeline_mode = #tpu.pipeline_mode<synchronous>, transform_indices = @transform_6, window_bounds = array<i64: 1, 8>}, {pipeline_mode = #tpu.pipeline_mode<synchronous>, transform_indices = @transform_7, window_bounds = array<i64: 1, 8>}, {transform_indices = @transform_8, window_bounds = array<i64: 64, 8>}, {transform_indices = @transform_9, window_bounds = array<i64: 64, 8>}, {transform_indices = @transform_10, window_bounds = array<i64: 64, 8>}]} {
    %c0 = arith.constant 0 : index
    %c0_0 = arith.constant 0 : index
    %0 = vector.load %arg1[%c0, %c0_0] : memref<64x16xf32, #tpu.memory_space<vmem>>, vector<64x16xf32>
    %c0_1 = arith.constant 0 : index
    %c0_2 = arith.constant 0 : index
    %1 = vector.load %arg2[%c0_1, %c0_2] : memref<16x128xf32, #tpu.memory_space<vmem>>, vector<16x128xf32>
    %c0_3 = arith.constant 0 : index
    %c0_4 = arith.constant 0 : index
    %2 = vector.load %arg3[%c0_3, %c0_4] : memref<1x128xf32, #tpu.memory_space<vmem>>, vector<1x128xf32>
    %cst = arith.constant dense<0.000000e+00> : vector<64x128xf32>
    %3 = tpu.matmul %0, %1, %cst {dimension_numbers = #tpu.dot_dimension_numbers<[1], [0], [0], [1], [0, 0, 1, 1], [], []>} : vector<64x16xf32>, vector<16x128xf32>, vector<64x128xf32> -> vector<64x128xf32>
    %4 = vector.broadcast %2 : vector<1x128xf32> to vector<64x128xf32>
    %5 = arith.addf %3, %4 : vector<64x128xf32>
    %6 = math.tanh %5 : vector<64x128xf32>
    %c0_5 = arith.constant 0 : index
    %c0_6 = arith.constant 0 : index
    %7 = vector.load %arg4[%c0_5, %c0_6] : memref<128x128xf32, #tpu.memory_space<vmem>>, vector<128x128xf32>
    %c0_7 = arith.constant 0 : index
    %c0_8 = arith.constant 0 : index
    %8 = vector.load %arg5[%c0_7, %c0_8] : memref<1x128xf32, #tpu.memory_space<vmem>>, vector<1x128xf32>
    %cst_9 = arith.constant dense<0.000000e+00> : vector<64x128xf32>
    %9 = tpu.matmul %6, %7, %cst_9 {dimension_numbers = #tpu.dot_dimension_numbers<[1], [0], [0], [1], [0, 0, 1, 1], [], []>} : vector<64x128xf32>, vector<128x128xf32>, vector<64x128xf32> -> vector<64x128xf32>
    %10 = vector.broadcast %8 : vector<1x128xf32> to vector<64x128xf32>
    %11 = arith.addf %9, %10 : vector<64x128xf32>
    %12 = math.tanh %11 : vector<64x128xf32>
    %c0_10 = arith.constant 0 : index
    %c0_11 = arith.constant 0 : index
    %13 = vector.load %arg6[%c0_10, %c0_11] : memref<128x8xf32, #tpu.memory_space<vmem>>, vector<128x8xf32>
    %c0_12 = arith.constant 0 : index
    %c0_13 = arith.constant 0 : index
    %14 = vector.load %arg7[%c0_12, %c0_13] : memref<1x8xf32, #tpu.memory_space<vmem>>, vector<1x8xf32>
    %cst_14 = arith.constant dense<0.000000e+00> : vector<64x8xf32>
    %15 = tpu.matmul %12, %13, %cst_14 {dimension_numbers = #tpu.dot_dimension_numbers<[1], [0], [0], [1], [0, 0, 1, 1], [], []>} : vector<64x128xf32>, vector<128x8xf32>, vector<64x8xf32> -> vector<64x8xf32>
    %16 = vector.broadcast %14 : vector<1x8xf32> to vector<64x8xf32>
    %17 = arith.addf %15, %16 : vector<64x8xf32>
    %c0_15 = arith.constant 0 : index
    %c0_16 = arith.constant 0 : index
    %18 = vector.load %arg10[%c0_15, %c0_16] : memref<64x8xf32, #tpu.memory_space<vmem>>, vector<64x8xf32>
    tpu.vector_store %arg10[%c0_15, %c0_16], %17 {strides = array<i32>} : memref<64x8xf32, #tpu.memory_space<vmem>>, vector<64x8xf32>,
    %c0_17 = arith.constant 0 : index
    %c0_18 = arith.constant 0 : index
    %19 = vector.load %arg8[%c0_17, %c0_18] : memref<1x8xf32, #tpu.memory_space<vmem>>, vector<1x8xf32>
    %c0_19 = arith.constant 0 : index
    %c0_20 = arith.constant 0 : index
    %20 = vector.load %arg9[%c0_19, %c0_20] : memref<64x8xf32, #tpu.memory_space<vmem>>, vector<64x8xf32>
    %21 = vector.broadcast %19 : vector<1x8xf32> to vector<64x8xf32>
    %22 = arith.mulf %21, %20 : vector<64x8xf32>
    %23 = arith.addf %17, %22 : vector<64x8xf32>
    %c0_21 = arith.constant 0 : index
    %c0_22 = arith.constant 0 : index
    %24 = vector.load %arg11[%c0_21, %c0_22] : memref<64x8xf32, #tpu.memory_space<vmem>>, vector<64x8xf32>
    tpu.vector_store %arg11[%c0_21, %c0_22], %23 {strides = array<i32>} : memref<64x8xf32, #tpu.memory_space<vmem>>, vector<64x8xf32>,
    return
  }
  func.func @transform_0(%arg0: i32) -> (i32, i32) {
    %c0_i32 = arith.constant 0 : i32
    %c0_i32_0 = arith.constant 0 : i32
    return %arg0, %c0_i32 : i32, i32
  }
  func.func @transform_1(%arg0: i32) -> (i32, i32) {
    %c0_i32 = arith.constant 0 : i32
    %c0_i32_0 = arith.constant 0 : i32
    %c0_i32_1 = arith.constant 0 : i32
    return %c0_i32, %c0_i32_0 : i32, i32
  }
  func.func @transform_2(%arg0: i32) -> (i32, i32) {
    %c0_i32 = arith.constant 0 : i32
    %c0_i32_0 = arith.constant 0 : i32
    %c0_i32_1 = arith.constant 0 : i32
    return %c0_i32, %c0_i32_0 : i32, i32
  }
  func.func @transform_3(%arg0: i32) -> (i32, i32) {
    %c0_i32 = arith.constant 0 : i32
    %c0_i32_0 = arith.constant 0 : i32
    %c0_i32_1 = arith.constant 0 : i32
    return %c0_i32, %c0_i32_0 : i32, i32
  }
  func.func @transform_4(%arg0: i32) -> (i32, i32) {
    %c0_i32 = arith.constant 0 : i32
    %c0_i32_0 = arith.constant 0 : i32
    %c0_i32_1 = arith.constant 0 : i32
    return %c0_i32, %c0_i32_0 : i32, i32
  }
  func.func @transform_5(%arg0: i32) -> (i32, i32) {
    %c0_i32 = arith.constant 0 : i32
    %c0_i32_0 = arith.constant 0 : i32
    %c0_i32_1 = arith.constant 0 : i32
    return %c0_i32, %c0_i32_0 : i32, i32
  }
  func.func @transform_6(%arg0: i32) -> (i32, i32) {
    %c0_i32 = arith.constant 0 : i32
    %c0_i32_0 = arith.constant 0 : i32
    %c0_i32_1 = arith.constant 0 : i32
    return %c0_i32, %c0_i32_0 : i32, i32
  }
  func.func @transform_7(%arg0: i32) -> (i32, i32) {
    %c0_i32 = arith.constant 0 : i32
    %c0_i32_0 = arith.constant 0 : i32
    %c0_i32_1 = arith.constant 0 : i32
    return %c0_i32, %c0_i32_0 : i32, i32
  }
  func.func @transform_8(%arg0: i32) -> (i32, i32) {
    %c0_i32 = arith.constant 0 : i32
    %c0_i32_0 = arith.constant 0 : i32
    return %arg0, %c0_i32 : i32, i32
  }
  func.func @transform_9(%arg0: i32) -> (i32, i32) {
    %c0_i32 = arith.constant 0 : i32
    %c0_i32_0 = arith.constant 0 : i32
    return %arg0, %c0_i32 : i32, i32
  }
  func.func @transform_10(%arg0: i32) -> (i32, i32) {
    %c0_i32 = arith.constant 0 : i32
    %c0_i32_0 = arith.constant 0 : i32
    return %arg0, %c0_i32 : i32, i32
  }
}

</mosaic_0001>

<llo_original>
// kernel: tpu_custom_call.1
$region0: #{tpu_custom_call.1}
  #allocation0 [shape = 'u32[]', space=smem, size = 0x4, offset = 0x4, fixed_abs, tag = 'smem constant byte address 0x4 - core index']
  #allocation1 [shape = 'u32[144,128]{1,0:T(1,128)}', space=vmem, size = 0x12000, scoped, tag = 'internal scratch']
  %s0 = inlined_call_operand.vmem [shape: f32[64,16], index: 0, kind: input, shape index: {}]
  %s1 = inlined_call_operand.vmem [shape: f32[16,128], index: 1, kind: input, shape index: {}]
  %s2 = inlined_call_operand.vmem [shape: f32[1,128], index: 2, kind: input, shape index: {}]
  %s3 = inlined_call_operand.vmem [shape: f32[128,128], index: 3, kind: input, shape index: {}]
  %s4 = inlined_call_operand.vmem [shape: f32[1,128], index: 4, kind: input, shape index: {}]
  %s5 = inlined_call_operand.vmem [shape: f32[128,8], index: 5, kind: input, shape index: {}]
  %s6 = inlined_call_operand.vmem [shape: f32[1,8], index: 6, kind: input, shape index: {}]
  %s7 = inlined_call_operand.vmem [shape: f32[1,8], index: 7, kind: input, shape index: {}]
  %s8 = inlined_call_operand.vmem [shape: f32[64,8], index: 8, kind: input, shape index: {}]
  %s9 = inlined_call_operand.vmem [shape: f32[64,8], index: 9, kind: output, shape index: {0}]
  %s10 = inlined_call_operand.vmem [shape: f32[64,8], index: 10, kind: output, shape index: {1}]
  %11 = xla_tuple %s9, %s10
  %s12 = sld [smem:[#allocation0]]
  $region54: #{tpu_custom_call.1} parent=0
    _
  %s14 = ssub.s32 1, %s12
  %s15 = scalar_select 0, %s14, %s12
  // Predicated region
  $region2: #{tpu_custom_call.1} parent=0 // pred_check
    _
  $region3: #{tpu_custom_call.1} parent=0 // pred_check_branch
    %17 = sbr.rel (0) target = $region5
  $region4: #{tpu_custom_call.1} parent=0 // pred_region
    _
  $region5: #{tpu_custom_call.1} parent=0 // pred_fallthru
    _
  // Predicated region
  $region6: #{tpu_custom_call.1} parent=0 // pred_check
    _
  $region7: #{tpu_custom_call.1} parent=0 // pred_check_branch
    %19 = sbr.rel (0) target = $region9
  $region8: #{tpu_custom_call.1} parent=0 // pred_region
    _
  $region9: #{tpu_custom_call.1} parent=0 // pred_fallthru
    _
  // Predicated region
  $region10: #{tpu_custom_call.1} parent=0 // pred_check
    _
  $region11: #{tpu_custom_call.1} parent=0 // pred_check_branch
    %21 = sbr.rel (0) target = $region13
  $region12: #{tpu_custom_call.1} parent=0 // pred_region
    _
  $region13: #{tpu_custom_call.1} parent=0 // pred_fallthru
    _
  // Predicated region
  $region14: #{tpu_custom_call.1} parent=0 // pred_check
    _
  $region15: #{tpu_custom_call.1} parent=0 // pred_check_branch
    %23 = sbr.rel (0) target = $region17
  $region16: #{tpu_custom_call.1} parent=0 // pred_region
    _
  $region17: #{tpu_custom_call.1} parent=0 // pred_fallthru
    _
  // Predicated region
  $region18: #{tpu_custom_call.1} parent=0 // pred_check
    _
  $region19: #{tpu_custom_call.1} parent=0 // pred_check_branch
    %25 = sbr.rel (0) target = $region21
  $region20: #{tpu_custom_call.1} parent=0 // pred_region
    _
  $region21: #{tpu_custom_call.1} parent=0 // pred_fallthru
    _
  // Predicated region
  $region22: #{tpu_custom_call.1} parent=0 // pred_check
    _
  $region23: #{tpu_custom_call.1} parent=0 // pred_check_branch
    %27 = sbr.rel (0) target = $region25
  $region24: #{tpu_custom_call.1} parent=0 // pred_region
    _
  $region25: #{tpu_custom_call.1} parent=0 // pred_fallthru
    _
  // Predicated region
  $region26: #{tpu_custom_call.1} parent=0 // pred_check
    _
  $region27: #{tpu_custom_call.1} parent=0 // pred_check_branch
    %29 = sbr.rel (0) target = $region29
  $region28: #{tpu_custom_call.1} parent=0 // pred_region
    _
  $region29: #{tpu_custom_call.1} parent=0 // pred_fallthru
    _
  // Predicated region
  $region30: #{tpu_custom_call.1} parent=0 // pred_check
    _
  $region31: #{tpu_custom_call.1} parent=0 // pred_check_branch
    %31 = sbr.rel (0) target = $region33
  $region32: #{tpu_custom_call.1} parent=0 // pred_region
    _
  $region33: #{tpu_custom_call.1} parent=0 // pred_fallthru
    _
  // Predicated region
  $region34: #{tpu_custom_call.1} parent=0 // pred_check
    _
  $region35: #{tpu_custom_call.1} parent=0 // pred_check_branch
    %33 = sbr.rel (0) target = $region37
  $region36: #{tpu_custom_call.1} parent=0 // pred_region
    _
  $region37: #{tpu_custom_call.1} parent=0 // pred_fallthru
    _
  %v34 = vld [vmem:[%s0] sm:$0xff]
  %v35 = vld [vmem:[%s0 + $0x8] sm:$0xff]
  %v36 = vld [vmem:[%s0 + $0x10] sm:$0xff]
  %v37 = vld [vmem:[%s0 + $0x18] sm:$0xff]
  %v38 = vld [vmem:[%s0 + $0x20] sm:$0xff]
  %v39 = vld [vmem:[%s0 + $0x28] sm:$0xff]
  %v40 = vld [vmem:[%s0 + $0x30] sm:$0xff]
  %v41 = vld [vmem:[%s0 + $0x38] sm:$0xff]
  %v42 = vld [vmem:[%s1] sm:$0xff]
  %v43 = vld [vmem:[%s1 + $0x8] sm:$0xff]
  %v44 = vld [vmem:[%s2] sm:$0x1]
  %v46 = vlaneseq
  %v47 = vshrl.u32 %v46, 7
  %v48 = vsub.s32 0, %v47
  %v49 = vrot.slane %v44, %v48
  %vm51 = vcmask 130048
  %v53 = vsel %vm51, %v34, 0
  %v56 = vsel %vm51, %v35, 0
  %v59 = vsel %vm51, %v36, 0
  %v62 = vsel %vm51, %v37, 0
  %v65 = vsel %vm51, %v38, 0
  %v68 = vsel %vm51, %v39, 0
  %v71 = vsel %vm51, %v40, 0
  %v74 = vsel %vm51, %v41, 0
  %76 = vmatprep.subr.mxu0 0.0
  %77 = vmatpush1.msra.mxu0 %v42
  %78 = vmatprep.subr.mxu0 0.0
  %79 = vmatpush1.msra.mxu0 %v43
  %80 = vmatprep.subr.mxu0 0.0
  %81 = vmatpush1.msra.mxu0 0.0
  %82 = vmatprep.subr.mxu0 0.0
  %83 = vmatpush1.msra.mxu0 0.0
  %84 = vmatprep.subr.mxu0 0.0
  %85 = vmatpush1.msra.mxu0 0.0
  %86 = vmatprep.subr.mxu0 0.0
  %87 = vmatpush1.msra.mxu0 0.0
  %88 = vmatprep.subr.mxu0 0.0
  %89 = vmatpush1.msra.mxu0 0.0
  %90 = vmatprep.subr.mxu0 0.0
  %91 = vmatpush1.msra.mxu0 0.0
  %92 = vmatprep.subr.mxu0 0.0
  %93 = vmatpush1.msra.mxu0 0.0
  %94 = vmatprep.subr.mxu0 0.0
  %95 = vmatpush1.msra.mxu0 0.0
  %96 = vmatprep.subr.mxu0 0.0
  %97 = vmatpush1.msra.mxu0 0.0
  %98 = vmatprep.subr.mxu0 0.0
  %99 = vmatpush1.msra.mxu0 0.0
  %100 = vmatprep.subr.mxu0 0.0
  %101 = vmatpush1.msra.mxu0 0.0
  %102 = vmatprep.subr.mxu0 0.0
  %103 = vmatpush1.msra.mxu0 0.0
  %104 = vmatprep.subr.mxu0 0.0
  %105 = vmatpush1.msra.mxu0 0.0
  %106 = vmatprep.subr.mxu0 0.0
  %107 = vmatpush1.msra.mxu0 0.0
  %108 = vmatprep.subr.mxu0 0.0
  %109 = vmatpush1.msra.mxu0 0.0
  %110 = vmatprep.subr.mxu0 0.0
  %111 = vmatpush1.msra.mxu0 0.0
  %112 = vmatprep.subr.mxu0 0.0
  %113 = vmatpush1.msra.mxu0 0.0
  %114 = vmatprep.subr.mxu0 0.0
  %115 = vmatpush1.msra.mxu0 0.0
  %116 = vmatprep.subr.mxu0 0.0
  %117 = vmatpush1.msra.mxu0 0.0
  %118 = vmatprep.subr.mxu0 0.0
  %119 = vmatpush1.msra.mxu0 0.0
  %120 = vmatprep.subr.mxu0 0.0
  %121 = vmatpush1.msra.mxu0 0.0
  %122 = vmatprep.subr.mxu0 0.0
  %123 = vmatpush1.msra.mxu0 0.0
  %124 = vmatprep.subr.mxu0 0.0
  %125 = vmatpush1.msra.mxu0 0.0
  %126 = vmatprep.subr.mxu0 0.0
  %127 = vmatpush1.msra.mxu0 0.0
  %128 = vmatprep.subr.mxu0 0.0
  %129 = vmatpush1.msra.mxu0 0.0
  %130 = vmatprep.subr.mxu0 0.0
  %131 = vmatpush1.msra.mxu0 0.0
  %132 = vmatprep.subr.mxu0 0.0
  %133 = vmatpush1.msra.mxu0 0.0
  %134 = vmatprep.subr.mxu0 0.0
  %135 = vmatpush1.msra.mxu0 0.0
  %136 = vmatprep.subr.mxu0 0.0
  %137 = vmatpush1.msra.mxu0 0.0
  %138 = vmatprep.subr.mxu0 0.0
  %139 = vmatpush1.msra.mxu0 0.0
  %140 = vmatprep.mubr.f32.mxu0 0.0
  %141 = vmatmul.mubr.f32.gmra.mrb[0].mxu0 %v53
  %v142 = vpop.f32.mrb[0].mxu0
  %v143 = vadd.f32 %v49, %v142
  %v144 = vpop.f32.mrb[0].mxu0
  %145 = vmatprep.mubr.f32.mxu0 0.0
  %146 = vmatmul.mubr.f32.gmra.mrb[0].mxu0 %v56
  %v147 = vpop.f32.mrb[0].mxu0
  %v148 = vadd.f32 %v49, %v147
  %v149 = vpop.f32.mrb[0].mxu0
  %150 = vmatprep.mubr.f32.mxu0 0.0
  %151 = vmatmul.mubr.f32.gmra.mrb[0].mxu0 %v59
  %v152 = vpop.f32.mrb[0].mxu0
  %v153 = vadd.f32 %v49, %v152
  %v154 = vpop.f32.mrb[0].mxu0
  %155 = vmatprep.mubr.f32.mxu0 0.0
  %156 = vmatmul.mubr.f32.gmra.mrb[0].mxu0 %v62
  %v157 = vpop.f32.mrb[0].mxu0
  %v158 = vadd.f32 %v49, %v157
  %v159 = vpop.f32.mrb[0].mxu0
  %160 = vmatprep.mubr.f32.mxu0 0.0
  %161 = vmatmul.mubr.f32.gmra.mrb[0].mxu0 %v65
  %v162 = vpop.f32.mrb[0].mxu0
  %v163 = vadd.f32 %v49, %v162
  %v164 = vpop.f32.mrb[0].mxu0
  %165 = vmatprep.mubr.f32.mxu0 0.0
  %166 = vmatmul.mubr.f32.gmra.mrb[0].mxu0 %v68
  %v167 = vpop.f32.mrb[0].mxu0
  %v168 = vadd.f32 %v49, %v167
  %v169 = vpop.f32.mrb[0].mxu0
  %170 = vmatprep.mubr.f32.mxu0 0.0
  %171 = vmatmul.mubr.f32.gmra.mrb[0].mxu0 %v71
  %v172 = vpop.f32.mrb[0].mxu0
  %v173 = vadd.f32 %v49, %v172
  %v174 = vpop.f32.mrb[0].mxu0
  %175 = vmatprep.mubr.f32.mxu0 0.0
  %176 = vmatmul.mubr.f32.gmra.mrb[0].mxu0 %v74
  %v177 = vpop.f32.mrb[0].mxu0
  %v178 = vadd.f32 %v49, %v177
  %v179 = vpop.f32.mrb[0].mxu0
  %180 = vdwg.mxu0
  %v181 = vtanh.pop %v143
  %v182 = vtanh.pop %v148
  %v183 = vtanh.pop %v153
  %v184 = vtanh.pop %v158
  %v185 = vtanh.pop %v163
  %v186 = vtanh.pop %v168
  %v187 = vtanh.pop %v173
  %v188 = vtanh.pop %v178
  %v189 = vld [vmem:[%s3] sm:$0xff]
  %v190 = vld [vmem:[%s3 + $0x8] sm:$0xff]
  %v191 = vld [vmem:[%s3 + $0x10] sm:$0xff]
  %v192 = vld [vmem:[%s3 + $0x18] sm:$0xff]
  %v193 = vld [vmem:[%s3 + $0x20] sm:$0xff]
  %v194 = vld [vmem:[%s3 + $0x28] sm:$0xff]
  %v195 = vld [vmem:[%s3 + $0x30] sm:$0xff]
  %v196 = vld [vmem:[%s3 + $0x38] sm:$0xff]
  %v197 = vld [vmem:[%s3 + $0x40] sm:$0xff]
  %v198 = vld [vmem:[%s3 + $0x48] sm:$0xff]
  %v199 = vld [vmem:[%s3 + $0x50] sm:$0xff]
  %v200 = vld [vmem:[%s3 + $0x58] sm:$0xff]
  %v201 = vld [vmem:[%s3 + $0x60] sm:$0xff]
  %v202 = vld [vmem:[%s3 + $0x68] sm:$0xff]
  %v203 = vld [vmem:[%s3 + $0x70] sm:$0xff]
  %v204 = vld [vmem:[%s3 + $0x78] sm:$0xff]
  %v205 = vld [vmem:[%s4] sm:$0x1]
  %v207 = vlaneseq
  %v208 = vshrl.u32 %v207, 7
  %v209 = vsub.s32 0, %v208
  %v210 = vrot.slane %v205, %v209
  %212 = vmatprep.subr.mxu0 0.0
  %213 = vmatpush1.msra.mxu0 %v189
  %214 = vmatprep.subr.mxu0 0.0
  %215 = vmatpush1.msra.mxu0 %v190
  %216 = vmatprep.subr.mxu0 0.0
  %217 = vmatpush1.msra.mxu0 %v191
  %218 = vmatprep.subr.mxu0 0.0
  %219 = vmatpush1.msra.mxu0 %v192
  %220 = vmatprep.subr.mxu0 0.0
  %221 = vmatpush1.msra.mxu0 %v193
  %222 = vmatprep.subr.mxu0 0.0
  %223 = vmatpush1.msra.mxu0 %v194
  %224 = vmatprep.subr.mxu0 0.0
  %225 = vmatpush1.msra.mxu0 %v195
  %226 = vmatprep.subr.mxu0 0.0
  %227 = vmatpush1.msra.mxu0 %v196
  %228 = vmatprep.subr.mxu0 0.0
  %229 = vmatpush1.msra.mxu0 %v197
  %230 = vmatprep.subr.mxu0 0.0
  %231 = vmatpush1.msra.mxu0 %v198
  %232 = vmatprep.subr.mxu0 0.0
  %233 = vmatpush1.msra.mxu0 %v199
  %234 = vmatprep.subr.mxu0 0.0
  %235 = vmatpush1.msra.mxu0 %v200
  %236 = vmatprep.subr.mxu0 0.0
  %237 = vmatpush1.msra.mxu0 %v201
  %238 = vmatprep.subr.mxu0 0.0
  %239 = vmatpush1.msra.mxu0 %v202
  %240 = vmatprep.subr.mxu0 0.0
  %241 = vmatpush1.msra.mxu0 %v203
  %242 = vmatprep.subr.mxu0 0.0
  %243 = vmatpush1.msra.mxu0 %v204
  %244 = vmatprep.subr.mxu0 0.0
  %245 = vmatpush1.msra.mxu0 0.0
  %246 = vmatprep.subr.mxu0 0.0
  %247 = vmatpush1.msra.mxu0 0.0
  %248 = vmatprep.subr.mxu0 0.0
  %249 = vmatpush1.msra.mxu0 0.0
  %250 = vmatprep.subr.mxu0 0.0
  %251 = vmatpush1.msra.mxu0 0.0
  %252 = vmatprep.subr.mxu0 0.0
  %253 = vmatpush1.msra.mxu0 0.0
  %254 = vmatprep.subr.mxu0 0.0
  %255 = vmatpush1.msra.mxu0 0.0
  %256 = vmatprep.subr.mxu0 0.0
  %257 = vmatpush1.msra.mxu0 0.0
  %258 = vmatprep.subr.mxu0 0.0
  %259 = vmatpush1.msra.mxu0 0.0
  %260 = vmatprep.subr.mxu0 0.0
  %261 = vmatpush1.msra.mxu0 0.0
  %262 = vmatprep.subr.mxu0 0.0
  %263 = vmatpush1.msra.mxu0 0.0
  %264 = vmatprep.subr.mxu0 0.0
  %265 = vmatpush1.msra.mxu0 0.0
  %266 = vmatprep.subr.mxu0 0.0
  %267 = vmatpush1.msra.mxu0 0.0
  %268 = vmatprep.subr.mxu0 0.0
  %269 = vmatpush1.msra.mxu0 0.0
  %270 = vmatprep.subr.mxu0 0.0
  %271 = vmatpush1.msra.mxu0 0.0
  %272 = vmatprep.subr.mxu0 0.0
  %273 = vmatpush1.msra.mxu0 0.0
  %274 = vmatprep.subr.mxu0 0.0
  %275 = vmatpush1.msra.mxu0 0.0
  %276 = vmatprep.mubr.f32.mxu0 0.0
  %277 = vmatmul.mubr.f32.gmra.mrb[0].mxu0 %v181
  %v278 = vpop.f32.mrb[0].mxu0
  %v279 = vadd.f32 %v210, %v278
  %v280 = vpop.f32.mrb[0].mxu0
  %281 = vmatprep.mubr.f32.mxu0 0.0
  %282 = vmatmul.mubr.f32.gmra.mrb[0].mxu0 %v182
  %v283 = vpop.f32.mrb[0].mxu0
  %v284 = vadd.f32 %v210, %v283
  %v285 = vpop.f32.mrb[0].mxu0
  %286 = vmatprep.mubr.f32.mxu0 0.0
  %287 = vmatmul.mubr.f32.gmra.mrb[0].mxu0 %v183
  %v288 = vpop.f32.mrb[0].mxu0
  %v289 = vadd.f32 %v210, %v288
  %v290 = vpop.f32.mrb[0].mxu0
  %291 = vmatprep.mubr.f32.mxu0 0.0
  %292 = vmatmul.mubr.f32.gmra.mrb[0].mxu0 %v184
  %v293 = vpop.f32.mrb[0].mxu0
  %v294 = vadd.f32 %v210, %v293
  %v295 = vpop.f32.mrb[0].mxu0
  %296 = vmatprep.mubr.f32.mxu0 0.0
  %297 = vmatmul.mubr.f32.gmra.mrb[0].mxu0 %v185
  %v298 = vpop.f32.mrb[0].mxu0
  %v299 = vadd.f32 %v210, %v298
  %v300 = vpop.f32.mrb[0].mxu0
  %301 = vmatprep.mubr.f32.mxu0 0.0
  %302 = vmatmul.mubr.f32.gmra.mrb[0].mxu0 %v186
  %v303 = vpop.f32.mrb[0].mxu0
  %v304 = vadd.f32 %v210, %v303
  %v305 = vpop.f32.mrb[0].mxu0
  %306 = vmatprep.mubr.f32.mxu0 0.0
  %307 = vmatmul.mubr.f32.gmra.mrb[0].mxu0 %v187
  %v308 = vpop.f32.mrb[0].mxu0
  %v309 = vadd.f32 %v210, %v308
  %v310 = vpop.f32.mrb[0].mxu0
  %311 = vmatprep.mubr.f32.mxu0 0.0
  %312 = vmatmul.mubr.f32.gmra.mrb[0].mxu0 %v188
  %v313 = vpop.f32.mrb[0].mxu0
  %v314 = vadd.f32 %v210, %v313
  %v315 = vpop.f32.mrb[0].mxu0
  %316 = vdwg.mxu0
  %v317 = vtanh.pop %v279
  %v318 = vtanh.pop %v284
  %v319 = vtanh.pop %v289
  %v320 = vtanh.pop %v294
  %v321 = vtanh.pop %v299
  %v322 = vtanh.pop %v304
  %v323 = vtanh.pop %v309
  %v324 = vtanh.pop %v314
  %v325 = vld [vmem:[%s5] sm:$0xff]
  %v326 = vld [vmem:[%s5 + $0x8] sm:$0xff]
  %v327 = vld [vmem:[%s5 + $0x10] sm:$0xff]
  %v328 = vld [vmem:[%s5 + $0x18] sm:$0xff]
  %v329 = vld [vmem:[%s5 + $0x20] sm:$0xff]
  %v330 = vld [vmem:[%s5 + $0x28] sm:$0xff]
  %v331 = vld [vmem:[%s5 + $0x30] sm:$0xff]
  %v332 = vld [vmem:[%s5 + $0x38] sm:$0xff]
  %v333 = vld [vmem:[%s5 + $0x40] sm:$0xff]
  %v334 = vld [vmem:[%s5 + $0x48] sm:$0xff]
  %v335 = vld [vmem:[%s5 + $0x50] sm:$0xff]
  %v336 = vld [vmem:[%s5 + $0x58] sm:$0xff]
  %v337 = vld [vmem:[%s5 + $0x60] sm:$0xff]
  %v338 = vld [vmem:[%s5 + $0x68] sm:$0xff]
  %v339 = vld [vmem:[%s5 + $0x70] sm:$0xff]
  %v340 = vld [vmem:[%s5 + $0x78] sm:$0xff]
  %v341 = vld [vmem:[%s6] sm:$0x1]
  %v343 = vlaneseq
  %v344 = vshrl.u32 %v343, 7
  %v345 = vsub.s32 0, %v344
  %v346 = vrot.slane %v341, %v345
  %348 = vmatprep.subr.mxu0 0.0
  %349 = vmatpush1.msra.mxu0 %v325
  %350 = vmatprep.subr.mxu0 0.0
  %351 = vmatpush1.msra.mxu0 %v326
  %352 = vmatprep.subr.mxu0 0.0
  %353 = vmatpush1.msra.mxu0 %v327
  %354 = vmatprep.subr.mxu0 0.0
  %355 = vmatpush1.msra.mxu0 %v328
  %356 = vmatprep.subr.mxu0 0.0
  %357 = vmatpush1.msra.mxu0 %v329
  %358 = vmatprep.subr.mxu0 0.0
  %359 = vmatpush1.msra.mxu0 %v330
  %360 = vmatprep.subr.mxu0 0.0
  %361 = vmatpush1.msra.mxu0 %v331
  %362 = vmatprep.subr.mxu0 0.0
  %363 = vmatpush1.msra.mxu0 %v332
  %364 = vmatprep.subr.mxu0 0.0
  %365 = vmatpush1.msra.mxu0 %v333
  %366 = vmatprep.subr.mxu0 0.0
  %367 = vmatpush1.msra.mxu0 %v334
  %368 = vmatprep.subr.mxu0 0.0
  %369 = vmatpush1.msra.mxu0 %v335
  %370 = vmatprep.subr.mxu0 0.0
  %371 = vmatpush1.msra.mxu0 %v336
  %372 = vmatprep.subr.mxu0 0.0
  %373 = vmatpush1.msra.mxu0 %v337
  %374 = vmatprep.subr.mxu0 0.0
  %375 = vmatpush1.msra.mxu0 %v338
  %376 = vmatprep.subr.mxu0 0.0
  %377 = vmatpush1.msra.mxu0 %v339
  %378 = vmatprep.subr.mxu0 0.0
  %379 = vmatpush1.msra.mxu0 %v340
  %380 = vmatprep.subr.mxu0 0.0
  %381 = vmatpush1.msra.mxu0 0.0
  %382 = vmatprep.subr.mxu0 0.0
  %383 = vmatpush1.msra.mxu0 0.0
  %384 = vmatprep.subr.mxu0 0.0
  %385 = vmatpush1.msra.mxu0 0.0
  %386 = vmatprep.subr.mxu0 0.0
  %387 = vmatpush1.msra.mxu0 0.0
  %388 = vmatprep.subr.mxu0 0.0
  %389 = vmatpush1.msra.mxu0 0.0
  %390 = vmatprep.subr.mxu0 0.0
  %391 = vmatpush1.msra.mxu0 0.0
  %392 = vmatprep.subr.mxu0 0.0
  %393 = vmatpush1.msra.mxu0 0.0
  %394 = vmatprep.subr.mxu0 0.0
  %395 = vmatpush1.msra.mxu0 0.0
  %396 = vmatprep.subr.mxu0 0.0
  %397 = vmatpush1.msra.mxu0 0.0
  %398 = vmatprep.subr.mxu0 0.0
  %399 = vmatpush1.msra.mxu0 0.0
  %400 = vmatprep.subr.mxu0 0.0
  %401 = vmatpush1.msra.mxu0 0.0
  %402 = vmatprep.subr.mxu0 0.0
  %403 = vmatpush1.msra.mxu0 0.0
  %404 = vmatprep.subr.mxu0 0.0
  %405 = vmatpush1.msra.mxu0 0.0
  %406 = vmatprep.subr.mxu0 0.0
  %407 = vmatpush1.msra.mxu0 0.0
  %408 = vmatprep.subr.mxu0 0.0
  %409 = vmatpush1.msra.mxu0 0.0
  %410 = vmatprep.subr.mxu0 0.0
  %411 = vmatpush1.msra.mxu0 0.0
  %412 = vmatprep.mubr.f32.mxu0 0.0
  %413 = vmatmul.mubr.f32.gmra.mrb[0].mxu0 %v317
  %v414 = vpop.f32.mrb[0].mxu0
  %v415 = vadd.f32 %v346, %v414
  %v416 = vpop.f32.mrb[0].mxu0
  %417 = vmatprep.mubr.f32.mxu0 0.0
  %418 = vmatmul.mubr.f32.gmra.mrb[0].mxu0 %v318
  %v419 = vpop.f32.mrb[0].mxu0
  %v420 = vadd.f32 %v346, %v419
  %v421 = vpop.f32.mrb[0].mxu0
  %422 = vmatprep.mubr.f32.mxu0 0.0
  %423 = vmatmul.mubr.f32.gmra.mrb[0].mxu0 %v319
  %v424 = vpop.f32.mrb[0].mxu0
  %v425 = vadd.f32 %v346, %v424
  %v426 = vpop.f32.mrb[0].mxu0
  %427 = vmatprep.mubr.f32.mxu0 0.0
  %428 = vmatmul.mubr.f32.gmra.mrb[0].mxu0 %v320
  %v429 = vpop.f32.mrb[0].mxu0
  %v430 = vadd.f32 %v346, %v429
  %v431 = vpop.f32.mrb[0].mxu0
  %432 = vmatprep.mubr.f32.mxu0 0.0
  %433 = vmatmul.mubr.f32.gmra.mrb[0].mxu0 %v321
  %v434 = vpop.f32.mrb[0].mxu0
  %v435 = vadd.f32 %v346, %v434
  %v436 = vpop.f32.mrb[0].mxu0
  %437 = vmatprep.mubr.f32.mxu0 0.0
  %438 = vmatmul.mubr.f32.gmra.mrb[0].mxu0 %v322
  %v439 = vpop.f32.mrb[0].mxu0
  %v440 = vadd.f32 %v346, %v439
  %v441 = vpop.f32.mrb[0].mxu0
  %442 = vmatprep.mubr.f32.mxu0 0.0
  %443 = vmatmul.mubr.f32.gmra.mrb[0].mxu0 %v323
  %v444 = vpop.f32.mrb[0].mxu0
  %v445 = vadd.f32 %v346, %v444
  %v446 = vpop.f32.mrb[0].mxu0
  %447 = vmatprep.mubr.f32.mxu0 0.0
  %448 = vmatmul.mubr.f32.gmra.mrb[0].mxu0 %v324
  %v449 = vpop.f32.mrb[0].mxu0
  %v450 = vadd.f32 %v346, %v449
  %v451 = vpop.f32.mrb[0].mxu0
  %452 = vdwg.mxu0
  %vm453 = vcmask 64512
  %454 = vst.msk [vmem:[%s9] sm:$0xff] %vm453, %v415
  %455 = vst.msk [vmem:[%s9 + $0x8] sm:$0xff] %vm453, %v420
  %456 = vst.msk [vmem:[%s9 + $0x10] sm:$0xff] %vm453, %v425
  %457 = vst.msk [vmem:[%s9 + $0x18] sm:$0xff] %vm453, %v430
  %458 = vst.msk [vmem:[%s9 + $0x20] sm:$0xff] %vm453, %v435
  %459 = vst.msk [vmem:[%s9 + $0x28] sm:$0xff] %vm453, %v440
  %460 = vst.msk [vmem:[%s9 + $0x30] sm:$0xff] %vm453, %v445
  %461 = vst.msk [vmem:[%s9 + $0x38] sm:$0xff] %vm453, %v450
  %v462 = vld [vmem:[%s7] sm:$0x1]
  %v463 = vld [vmem:[%s8] sm:$0xff]
  %v464 = vld [vmem:[%s8 + $0x8] sm:$0xff]
  %v465 = vld [vmem:[%s8 + $0x10] sm:$0xff]
  %v466 = vld [vmem:[%s8 + $0x18] sm:$0xff]
  %v467 = vld [vmem:[%s8 + $0x20] sm:$0xff]
  %v468 = vld [vmem:[%s8 + $0x28] sm:$0xff]
  %v469 = vld [vmem:[%s8 + $0x30] sm:$0xff]
  %v470 = vld [vmem:[%s8 + $0x38] sm:$0xff]
  %v472 = vlaneseq
  %v473 = vshrl.u32 %v472, 7
  %v474 = vsub.s32 0, %v473
  %v475 = vrot.slane %v462, %v474
  %v477 = vmul.f32 %v475, %v463
  %v478 = vmul.f32 %v475, %v464
  %v479 = vmul.f32 %v475, %v465
  %v480 = vmul.f32 %v475, %v466
  %v481 = vmul.f32 %v475, %v467
  %v482 = vmul.f32 %v475, %v468
  %v483 = vmul.f32 %v475, %v469
  %v484 = vmul.f32 %v475, %v470
  %v485 = vadd.f32 %v415, %v477
  %v486 = vadd.f32 %v420, %v478
  %v487 = vadd.f32 %v425, %v479
  %v488 = vadd.f32 %v430, %v480
  %v489 = vadd.f32 %v435, %v481
  %v490 = vadd.f32 %v440, %v482
  %v491 = vadd.f32 %v445, %v483
  %v492 = vadd.f32 %v450, %v484
  %493 = vst.msk [vmem:[%s10] sm:$0xff] %vm453, %v485
  %494 = vst.msk [vmem:[%s10 + $0x8] sm:$0xff] %vm453, %v486
  %495 = vst.msk [vmem:[%s10 + $0x10] sm:$0xff] %vm453, %v487
  %496 = vst.msk [vmem:[%s10 + $0x18] sm:$0xff] %vm453, %v488
  %497 = vst.msk [vmem:[%s10 + $0x20] sm:$0xff] %vm453, %v489
  %498 = vst.msk [vmem:[%s10 + $0x28] sm:$0xff] %vm453, %v490
  %499 = vst.msk [vmem:[%s10 + $0x30] sm:$0xff] %vm453, %v491
  %500 = vst.msk [vmem:[%s10 + $0x38] sm:$0xff] %vm453, %v492
  // Predicated region
  $region38: #{tpu_custom_call.1} parent=0 // pred_check
    _
  $region39: #{tpu_custom_call.1} parent=0 // pred_check_branch
    %502 = sbr.rel (0) target = $region41
  $region40: #{tpu_custom_call.1} parent=0 // pred_region
    _
  $region41: #{tpu_custom_call.1} parent=0 // pred_fallthru
    _
  // Predicated region
  $region42: #{tpu_custom_call.1} parent=0 // pred_check
    _
  $region43: #{tpu_custom_call.1} parent=0 // pred_check_branch
    %504 = sbr.rel (0) target = $region45
  $region44: #{tpu_custom_call.1} parent=0 // pred_region
    _
  $region45: #{tpu_custom_call.1} parent=0 // pred_fallthru
    _
  // Predicated region
  $region46: #{tpu_custom_call.1} parent=0 // pred_check
    _
  $region47: #{tpu_custom_call.1} parent=0 // pred_check_branch
    %506 = sbr.rel (0) target = $region49
  $region48: #{tpu_custom_call.1} parent=0 // pred_region
    _
  $region49: #{tpu_custom_call.1} parent=0 // pred_fallthru
    _
  // Predicated region
  $region50: #{tpu_custom_call.1} parent=0 // pred_check
    _
  $region51: #{tpu_custom_call.1} parent=0 // pred_check_branch
    %508 = sbr.rel (0) target = $region53
  $region52: #{tpu_custom_call.1} parent=0 // pred_region
    _
  $region53: #{tpu_custom_call.1} parent=0 // pred_fallthru
    _

</llo_original>
